<compile_context>
chip_gen: v5e
topology: v5e:2x2
jax: 0.10.0
libtpu: 0.0.40
codegen_flags: <defaults>
</compile_context>

<pallas_src>
import jax
import jax.numpy as jnp
from jax.experimental import pallas as pl
from jax.experimental.pallas import tpu as pltpu


# ---------------------------------------------------------------------------
# Kernel body (shared by both paths): elementwise add on the VPU.
# Shapes are broadcast-compatible, so no explicit broadcast_in_dim is emitted
# in Path A (equal shapes) and only a cheap sublane broadcast in Path B.
# ---------------------------------------------------------------------------
def _pe_add_kernel(x_ref, pe_ref, o_ref):
    o_ref[...] = x_ref[...] + pe_ref[...]


def make_pe(max_seq_len, embedding_dim, dtype=jnp.float32):
    """Sinusoidal positional-encoding buffer, matching the PyTorch init."""
    position = jnp.arange(max_seq_len, dtype=jnp.float32)[:, None]           # (L, 1)
    div_term = jnp.exp(
        jnp.arange(0, embedding_dim, 2, dtype=jnp.float32)
        * (-jnp.log(10000.0) / embedding_dim)
    )                                                                         # (ceil(D/2),)
    angles = position * div_term                                              # (L, ceil(D/2))
    pe = jnp.zeros((max_seq_len, embedding_dim), dtype=jnp.float32)
    pe = pe.at[:, 0::2].set(jnp.sin(angles))
    # Guard odd embedding_dim: cos half only has floor(D/2) columns.
    pe = pe.at[:, 1::2].set(jnp.cos(angles)[:, : embedding_dim // 2])
    return pe.astype(dtype)


# Double-buffered working-set budget (sized for v7x: 64 MiB physical / 32 MiB scoped VMEM).
_VMEM_WORKING_SET_BUDGET = 24 * 1024 * 1024
_VMEM_LIMIT_BYTES = 48 * 1024 * 1024


def _round_down(x, m):
    return max(m, (x // m) * m)


def _forward_rows(x, pe_sd):
    """Path A: D is a multiple of 128 -> tile the sequence axis, keep pe resident over batch."""
    B, S, D = x.shape
    itemsize = jnp.dtype(x.dtype).itemsize
    # Per grid step: x, pe, out blocks of (ts, D), each double-buffered -> 6 * ts * D * itemsize.
    ts_max = _VMEM_WORKING_SET_BUDGET // (6 * D * itemsize)
    if S <= ts_max:
        ts = S                                  # whole sequence fits: one tile per batch elem
    else:
        ts = _round_down(ts_max, 16)            # multiple of 8 (16 keeps it bf16-safe)
    grid = (pl.cdiv(S, ts), B)                  # batch innermost -> pe tile re-DMA is skipped

    return pl.pallas_call(
        _pe_add_kernel,
        out_shape=jax.ShapeDtypeStruct((B, S, D), x.dtype),
        grid_spec=pltpu.PrefetchScalarGridSpec(
            num_scalar_prefetch=0,
            grid=grid,
            in_specs=[
                pl.BlockSpec((pl.Squeezed(), ts, D), lambda s, b: (b, s, 0)),
                pl.BlockSpec((ts, D), lambda s, b: (s, 0)),   # constant in b -> stays resident
            ],
            out_specs=pl.BlockSpec((pl.Squeezed(), ts, D), lambda s, b: (b, s, 0)),
        ),
        compiler_params=pltpu.CompilerParams(
            dimension_semantics=("parallel", "parallel"),     # shards over both v7x TCs
            vmem_limit_bytes=_VMEM_LIMIT_BYTES,
        ),
    )(x, pe_sd)


def _forward_flat(x, pe_sd):
    """Path B: D not lane-dense -> flatten (S, D) so the output last dim is a multiple of 128."""
    B, S, D = x.shape
    itemsize = jnp.dtype(x.dtype).itemsize
    F = S * D
    x2 = x.reshape(B, F)
    pe2 = pe_sd.reshape(1, F)

    # Per grid step: x/out blocks (B, tc) + pe block (1, tc), each double-buffered.
    tc_max = _VMEM_WORKING_SET_BUDGET // (2 * (2 * B + 1) * itemsize)
    if F <= tc_max or F <= 128:
        tc = F                                  # full flat dim in one block
    else:
        tc = _round_down(min(tc_max, F), 128)   # lane-dense tile
    grid = (pl.cdiv(F, tc),)

    out = pl.pallas_call(
        _pe_add_kernel,
        out_shape=jax.ShapeDtypeStruct((B, F), x.dtype),
        grid_spec=pltpu.PrefetchScalarGridSpec(
            num_scalar_prefetch=0,
            grid=grid,
            in_specs=[
                pl.BlockSpec((B, tc), lambda c: (0, c)),
                pl.BlockSpec((1, tc), lambda c: (0, c)),
            ],
            out_specs=pl.BlockSpec((B, tc), lambda c: (0, c)),
        ),
        compiler_params=pltpu.CompilerParams(
            dimension_semantics=("parallel",),
            vmem_limit_bytes=_VMEM_LIMIT_BYTES,
        ),
    )(x2, pe2)
    return out.reshape(B, S, D)


def positional_encoding_forward(x, pe, dropout_p=0.0):
    """x: (B, S, D). Returns dropout(x + pe[:S, :D]); dropout with p=0.0 is identity."""
    B, S, D = x.shape
    pe_sd = pe[:S, :D].astype(x.dtype)
    if D % 128 == 0:
        out = _forward_rows(x, pe_sd)
    else:
        out = _forward_flat(x, pe_sd)
    # TODO(synk): dropout_p > 0 (training mode) would need pltpu.prng_seed/prng_random_bits
    # inside the kernel; the module default p=0.0 is an identity, which is what we implement.
    return out


if __name__ == "__main__":
    # Small test shape from the module's forward: (batch, seq, embedding_dim).
    B, S, D = 2, 8, 32
    max_seq_len = 64

    key = jax.random.PRNGKey(0)
    x = jax.random.normal(key, (B, S, D), dtype=jnp.float32)
    pe = make_pe(max_seq_len, D)

    # Path B (D=32 not lane-dense -> flattened layout).
    out = positional_encoding_forward(x, pe)
    out = jax.block_until_ready(out)
    ref = x + pe[None, :S, :D]
    assert out.shape == (B, S, D)
    assert jnp.allclose(out, ref, atol=1e-6), "mismatch vs reference (flat path)"

    # Path A (lane-dense D=128 -> sequence-tiled layout) on an equally small shape.
    B2, S2, D2 = 2, 16, 128
    x2 = jax.random.normal(jax.random.PRNGKey(1), (B2, S2, D2), dtype=jnp.float32)
    pe2 = make_pe(max_seq_len, D2)
    out2 = jax.block_until_ready(positional_encoding_forward(x2, pe2))
    ref2 = x2 + pe2[None, :S2, :D2]
    assert out2.shape == (B2, S2, D2)
    assert jnp.allclose(out2, ref2, atol=1e-6), "mismatch vs reference (row path)"

    print("KERNEL_OK")
</pallas_src>

<mosaic_0001>
module attributes {stable_mosaic.version = 11 : i64} {
  func.func @_pe_add_kernel(%arg0: i32, %arg1: memref<2x256xf32, #tpu.memory_space<vmem>>, %arg2: memref<1x256xf32, #tpu.memory_space<vmem>>, %arg3: memref<2x256xf32, #tpu.memory_space<vmem>>) attributes {dimension_semantics = [#tpu.dimension_semantics<parallel>], iteration_bounds = array<i64: 1>, scalar_prefetch = 0 : i64, scratch_operands = 0 : i64, tpu.core_type = #tpu.core_type<tc>, window_params = [{transform_indices = @transform_0, window_bounds = array<i64: 2, 256>}, {transform_indices = @transform_1, window_bounds = array<i64: 1, 256>}, {transform_indices = @transform_2, window_bounds = array<i64: 2, 256>}]} {
    %c0 = arith.constant 0 : index
    %c0_0 = arith.constant 0 : index
    %0 = vector.load %arg1[%c0, %c0_0] : memref<2x256xf32, #tpu.memory_space<vmem>>, vector<2x256xf32>
    %c0_1 = arith.constant 0 : index
    %c0_2 = arith.constant 0 : index
    %1 = vector.load %arg2[%c0_1, %c0_2] : memref<1x256xf32, #tpu.memory_space<vmem>>, vector<1x256xf32>
    %2 = vector.broadcast %1 : vector<1x256xf32> to vector<2x256xf32>
    %3 = arith.addf %0, %2 : vector<2x256xf32>
    %c0_3 = arith.constant 0 : index
    %c0_4 = arith.constant 0 : index
    %4 = vector.load %arg3[%c0_3, %c0_4] : memref<2x256xf32, #tpu.memory_space<vmem>>, vector<2x256xf32>
    tpu.vector_store %arg3[%c0_3, %c0_4], %3 {strides = array<i32>} : memref<2x256xf32, #tpu.memory_space<vmem>>, vector<2x256xf32>,
    return
  }
  func.func @transform_0(%arg0: i32) -> (i32, i32) {
    %c0_i32 = arith.constant 0 : i32
    %c0_i32_0 = arith.constant 0 : i32
    return %c0_i32, %arg0 : i32, i32
  }
  func.func @transform_1(%arg0: i32) -> (i32, i32) {
    %c0_i32 = arith.constant 0 : i32
    %c0_i32_0 = arith.constant 0 : i32
    return %c0_i32, %arg0 : i32, i32
  }
  func.func @transform_2(%arg0: i32) -> (i32, i32) {
    %c0_i32 = arith.constant 0 : i32
    %c0_i32_0 = arith.constant 0 : i32
    return %c0_i32, %arg0 : i32, i32
  }
}

</mosaic_0001>

<llo_original>
// kernel: tpu_custom_call.1
$region0: #{tpu_custom_call.1}
  #allocation0 [shape = 'u32[]', space=smem, size = 0x4, offset = 0x4, fixed_abs, tag = 'smem constant byte address 0x4 - core index']
  #allocation1 [shape = 'u32[72,128]{1,0:T(1,128)}', space=vmem, size = 0x9000, scoped, tag = 'internal scratch']
  %s0 = inlined_call_operand.hbm [shape: f32[2,256], index: 0, kind: input, shape index: {}]
  %s1 = inlined_call_operand.hbm [shape: f32[1,256], index: 1, kind: input, shape index: {}]
  %s2 = inlined_call_operand.hbm [shape: f32[2,256], index: 2, kind: output, shape index: {}]
  %s3 = sld [smem:[#allocation0]]
  $region26: #{tpu_custom_call.1} parent=0
    _
  %s5 = ssub.s32 1, %s3
  %s6 = scalar_select 0, %s5, %s3
  $region1: #{tpu_custom_call.1} parent=0
    #allocation2 [shape = 'u8[2048]{0}', space=vmem, size = 0x800, scoped, tag = 'input window, operand 0, single buffered']
    #allocation3 [shape = 's32[1]{0}', space=sflag, size = 0x4, scoped, tag = 'scoped memory for tpu_custom_call.1']
    #allocation4 [shape = 's32[1]{0}', space=sflag, size = 0x4, scoped, tag = 'scoped memory for tpu_custom_call.1']
    #allocation5 [shape = 'u8[1024]{0}', space=vmem, size = 0x400, scoped, tag = 'input window, operand 1, single buffered']
    #allocation6 [shape = 's32[1]{0}', space=sflag, size = 0x4, scoped, tag = 'scoped memory for tpu_custom_call.1']
    #allocation7 [shape = 'u8[2048]{0}', space=vmem, size = 0x800, scoped, tag = 'output window, operand 0, single buffered']
    %7 = vsyncpa [#allocation3], 0
    %8 = vsyncpa [#allocation6], 0
    %9 = vsyncpa [#allocation4], 0
    // Predicated region
    $region2: #{tpu_custom_call.1} parent=1 // pred_check
      _
    $region3: #{tpu_custom_call.1} parent=1 // pred_check_branch
      %11 = sbr.rel (0) target = $region5
    $region4: #{tpu_custom_call.1} parent=1 // pred_region
      %13 = vsyncadd [#allocation3], 0
      %s15 = sshll.u32 %s0, 4
      %s16 = int_to_ptr.hbm [resolvable:$true] %s15
      %s17 = sshll.u32 [#allocation2], 4
      %s18 = int_to_ptr.vmem [resolvable:$true] %s17
      %20 = dma.hbm_to_vmem [thread:$0]  %s16, 64, %s18, [#allocation3]
    $region5: #{tpu_custom_call.1} parent=1 // pred_fallthru
      _
    // Predicated region
    $region6: #{tpu_custom_call.1} parent=1 // pred_check
      _
    $region7: #{tpu_custom_call.1} parent=1 // pred_check_branch
      %22 = sbr.rel (0) target = $region9
    $region8: #{tpu_custom_call.1} parent=1 // pred_region
      %24 = vsyncadd [#allocation6], 0
      %s26 = sshll.u32 %s1, 4
      %s27 = int_to_ptr.hbm [resolvable:$true] %s26
      %s28 = sshll.u32 [#allocation5], 4
      %s29 = int_to_ptr.vmem [resolvable:$true] %s28
      %31 = dma.hbm_to_vmem [thread:$0]  %s27, 32, %s29, [#allocation6]
    $region9: #{tpu_custom_call.1} parent=1 // pred_fallthru
      _
    // Predicated region
    $region10: #{tpu_custom_call.1} parent=1 // pred_check
      _
    $region11: #{tpu_custom_call.1} parent=1 // pred_check_branch
      %33 = sbr.rel (0) target = $region13
    $region12: #{tpu_custom_call.1} parent=1 // pred_region
      %35 = dma.done [#allocation3], 64
    $region13: #{tpu_custom_call.1} parent=1 // pred_fallthru
      _
    // Predicated region
    $region14: #{tpu_custom_call.1} parent=1 // pred_check
      _
    $region15: #{tpu_custom_call.1} parent=1 // pred_check_branch
      %37 = sbr.rel (0) target = $region17
    $region16: #{tpu_custom_call.1} parent=1 // pred_region
      %39 = dma.done [#allocation6], 32
    $region17: #{tpu_custom_call.1} parent=1 // pred_fallthru
      _
    %v40 = vld [vmem:[#allocation2] sm:$0xf]
    %v41 = vld [vmem:[#allocation5] sm:$0x3]
    %v43 = vperm.slane %v41, 0
    %v44 = vperm.slane %v41, 1
    %v45 = vrot.slane %v44, 6
    %vm46 = vcmask 1041408
    %v47 = vsel %vm46, %v43, %v45
    %v49 = vadd.f32 %v40, %v47
    %50 = vst [vmem:[#allocation7] sm:$0xf] %v49
    // Predicated region
    $region18: #{tpu_custom_call.1} parent=1 // pred_check
      _
    $region19: #{tpu_custom_call.1} parent=1 // pred_check_branch
      %52 = sbr.rel (0) target = $region21
    $region20: #{tpu_custom_call.1} parent=1 // pred_region
      %54 = vsyncadd [#allocation4], 0
      %s56 = sshll.u32 [#allocation7], 4
      %s57 = int_to_ptr.vmem [resolvable:$true] %s56
      %s58 = sshll.u32 %s2, 4
      %s59 = int_to_ptr.hbm [resolvable:$true] %s58
      %61 = dma.vmem_to_hbm [thread:$0]  %s57, 64, %s59, [#allocation4]
    $region21: #{tpu_custom_call.1} parent=1 // pred_fallthru
      _
    // Predicated region
    $region22: #{tpu_custom_call.1} parent=1 // pred_check
      _
    $region23: #{tpu_custom_call.1} parent=1 // pred_check_branch
      %63 = sbr.rel (0) target = $region25
    $region24: #{tpu_custom_call.1} parent=1 // pred_region
      %65 = dma.done [#allocation4], 64
    $region25: #{tpu_custom_call.1} parent=1 // pred_fallthru
      _
    %66 = vsyncpa [#allocation3], 1
    %67 = vsyncpa [#allocation6], 1
    %68 = vsyncpa [#allocation4], 1

</llo_original>
